<compile_context>
chip_gen: v7x
topology: tpu7x:2x2x1
jax: 0.10.0
libtpu: 0.0.40
codegen_flags: <defaults>
</compile_context>

<pallas_src>
import functools

import jax
import jax.numpy as jnp
from jax.experimental import pallas as pl
from jax.experimental.pallas import tpu as pltpu


def _round_up(n, m):
    return (n + m - 1) // m * m


def _mlp_kernel(x_ref, w_ref, b_ref, o_ref):
    """Fused MLP forward on one (TB, D) batch tile.

    x_ref: (TB, D)            bf16   activations (lane-dense, zero-padded features)
    w_ref: (L, D, D)          bf16   packed, padded weight stack (VMEM-resident)
    b_ref: (L, 1, D)          f32    packed, padded bias stack (last layer pads = -1e30)
    o_ref: (TB, D)            f32    lane-dense softmax output (pad columns are exactly 0)
    """
    n_layers = w_ref.shape[0]          # static at trace time
    h = x_ref[...]                     # bf16 (TB, D)

    # hidden layers: Linear (bf16 MXU, f32 acc) + bias + ReLU ; Dropout(p=0) -> identity
    for i in range(n_layers - 1):
        z = jnp.dot(h, w_ref[i], preferred_element_type=jnp.float32) + b_ref[i]
        h = jnp.maximum(z, 0.0).astype(jnp.bfloat16)

    # output layer: Linear + Softmax(dim=-1); padded logits are ~-1e30 -> exp == 0
    logits = (jnp.dot(h, w_ref[n_layers - 1], preferred_element_type=jnp.float32)
              + b_ref[n_layers - 1])
    m = jnp.max(logits, axis=-1, keepdims=True)
    e = jnp.exp(logits - m)
    denom = jnp.sum(e, axis=-1, keepdims=True)
    o_ref[...] = (e * pl.reciprocal(denom, approx=False)).astype(o_ref.dtype)


@jax.jit
def rhc_forward(x, weights, biases):
    """Pallas wrapper.

    x:       (B, input_dim) float32
    weights: list of L arrays, layer i shaped (in_i, out_i)  (already transposed vs torch)
    biases:  list of L arrays, layer i shaped (out_i,)
    returns  (B, out_dim) float32, rows sum to 1 (softmax).
    """
    B, input_dim = x.shape
    n_layers = len(weights)
    out_dim = weights[-1].shape[1]

    dims = [input_dim] + [w.shape[1] for w in weights]
    D = _round_up(max(dims + [128]), 128)        # single lane-dense padded feature width
    NEG = -1e30                                  # output-layer bias pad -> softmax pad == 0

    # ---- pack + pad parameters: one weight stack, one bias stack -------------------
    w_pack = jnp.zeros((n_layers, D, D), jnp.float32)
    b_pack = jnp.zeros((n_layers, 1, D), jnp.float32)
    for i, (w, b) in enumerate(zip(weights, biases)):
        w_pack = w_pack.at[i, :w.shape[0], :w.shape[1]].set(w)
        fill = 0.0 if i < n_layers - 1 else NEG
        b_row = jnp.full((D,), fill, jnp.float32).at[:b.shape[0]].set(b)
        b_pack = b_pack.at[i, 0, :].set(b_row)
    w_pack = w_pack.astype(jnp.bfloat16)         # MXU operands in bf16, f32 accumulate

    # ---- batch tiling ---------------------------------------------------------------
    TB = min(512, _round_up(B, 8))               # big tiles when B is large, else full B
    B_pad = _round_up(B, TB)
    x_pad = (jnp.zeros((B_pad, D), jnp.float32)
             .at[:B, :input_dim].set(x)
             .astype(jnp.bfloat16))

    out_padded = pl.pallas_call(
        _mlp_kernel,
        out_shape=jax.ShapeDtypeStruct((B_pad, D), jnp.float32),
        grid_spec=pltpu.PrefetchScalarGridSpec(
            num_scalar_prefetch=0,
            grid=(B_pad // TB,),
            in_specs=[
                pl.BlockSpec((TB, D), lambda i: (i, 0)),                 # x: tiled over batch
                pl.BlockSpec((n_layers, D, D), lambda i: (0, 0, 0)),     # weights: resident
                pl.BlockSpec((n_layers, 1, D), lambda i: (0, 0, 0)),     # biases:  resident
            ],
            out_specs=pl.BlockSpec((TB, D), lambda i: (i, 0)),           # lane-dense output
        ),
        compiler_params=pltpu.CompilerParams(
            dimension_semantics=("parallel",)),                          # megacore on v7x
    )(x_pad, w_pack, b_pack)

    return out_padded[:B, :out_dim]


def _init_linear(key, fan_in, fan_out):
    """Deterministic init mimicking torch.nn.Linear defaults.

    Returns W already transposed to (fan_in, fan_out) and b of shape (fan_out,).
    """
    kw, kb = jax.random.split(key)
    bound = 1.0 / jnp.sqrt(jnp.float32(fan_in))
    w = jax.random.uniform(kw, (fan_in, fan_out), jnp.float32, -bound, bound)
    b = jax.random.uniform(kb, (fan_out,), jnp.float32, -bound, bound)
    return w, b


def _reference_bf16(x, weights, biases):
    """Pure-JAX reference mirroring the kernel's bf16-MXU / f32-elementwise math."""
    h = x.astype(jnp.bfloat16)
    for i in range(len(weights) - 1):
        z = jnp.dot(h, weights[i].astype(jnp.bfloat16),
                    preferred_element_type=jnp.float32) + biases[i]
        h = jnp.maximum(z, 0.0).astype(jnp.bfloat16)
    logits = jnp.dot(h, weights[-1].astype(jnp.bfloat16),
                     preferred_element_type=jnp.float32) + biases[-1]
    return jax.nn.softmax(logits, axis=-1)


def _reference_f32(x, weights, biases):
    """Full-f32 reference (original torch semantics) for a looser sanity check."""
    h = x
    for i in range(len(weights) - 1):
        h = jnp.maximum(jnp.dot(h, weights[i]) + biases[i], 0.0)
    return jax.nn.softmax(jnp.dot(h, weights[-1]) + biases[-1], axis=-1)


if __name__ == "__main__":
    # Module config consistent with
    # RHCModule(input_dim=16, output_dim=8, hidden_units=[32, 32], hidden_layers=2,
    #           dropout_percent=0).
    input_dim = 16
    hidden_units = [32, 32]
    output_dim = 8

    key = jax.random.PRNGKey(0)
    kx, kx2, k0, k1, k2 = jax.random.split(key, 5)

    w0, b0 = _init_linear(k0, input_dim, hidden_units[0])
    w1, b1 = _init_linear(k1, hidden_units[0], hidden_units[1])
    w2, b2 = _init_linear(k2, hidden_units[1], output_dim)
    weights = [w0, w1, w2]
    biases = [b0, b1, b2]

    # case 1: small batch (exercises batch padding 6 -> 8, single grid step)
    x_small = jax.random.normal(kx, (6, input_dim), jnp.float32)
    out_small = jax.block_until_ready(rhc_forward(x_small, weights, biases))

    # case 2: larger batch (exercises multi-step batch grid, 600 -> 2 tiles of 512)
    x_big = jax.random.normal(kx2, (600, input_dim), jnp.float32)
    out_big = jax.block_until_ready(rhc_forward(x_big, weights, biases))

    for x, out in ((x_small, out_small), (x_big, out_big)):
        ref_bf16 = _reference_bf16(x, weights, biases)
        ref_f32 = _reference_f32(x, weights, biases)
        assert out.shape == (x.shape[0], output_dim)
        assert bool(jnp.all(jnp.isfinite(out)))
        # tight check vs a reference using identical bf16-MXU / f32-elementwise math
        assert jnp.allclose(out, ref_bf16, atol=1e-4, rtol=1e-3), "mismatch vs bf16 reference"
        # loose semantic check vs the pure-f32 (torch-equivalent) reference
        assert jnp.allclose(out, ref_f32, atol=2e-2, rtol=2e-2), "mismatch vs f32 reference"
        # softmax rows sum to 1
        assert jnp.allclose(jnp.sum(out, axis=-1), 1.0, atol=1e-5), "row sums != 1"

    print("KERNEL_OK")
</pallas_src>

<mosaic_0001>
module attributes {stable_mosaic.version = 11 : i64} {
  func.func @_mlp_kernel(%arg0: i32, %arg1: memref<8x128xbf16, #tpu.memory_space<vmem>>, %arg2: memref<3x128x128xbf16, #tpu.memory_space<vmem>>, %arg3: memref<3x1x128xf32, #tpu.memory_space<vmem>>, %arg4: memref<8x128xf32, #tpu.memory_space<vmem>>) attributes {dimension_semantics = [#tpu.dimension_semantics<parallel>], iteration_bounds = array<i64: 1>, scalar_prefetch = 0 : i64, scratch_operands = 0 : i64, tpu.core_type = #tpu.core_type<tc>, window_params = [{transform_indices = @transform_0, window_bounds = array<i64: 8, 128>}, {pipeline_mode = #tpu.pipeline_mode<synchronous>, transform_indices = @transform_1, window_bounds = array<i64: 3, 128, 128>}, {pipeline_mode = #tpu.pipeline_mode<synchronous>, transform_indices = @transform_2, window_bounds = array<i64: 3, 1, 128>}, {transform_indices = @transform_3, window_bounds = array<i64: 8, 128>}]} {
    %c0 = arith.constant 0 : index
    %c0_0 = arith.constant 0 : index
    %0 = vector.load %arg1[%c0, %c0_0] : memref<8x128xbf16, #tpu.memory_space<vmem>>, vector<8x128xbf16>
    %c0_1 = arith.constant 0 : index
    %c0_2 = arith.constant 0 : index
    %c0_3 = arith.constant 0 : index
    %1 = vector.load %arg2[%c0_1, %c0_2, %c0_3] : memref<3x128x128xbf16, #tpu.memory_space<vmem>>, vector<1x128x128xbf16>
    %2 = vector.shape_cast %1 : vector<1x128x128xbf16> to vector<128x128xbf16>
    %cst = arith.constant dense<0.000000e+00> : vector<8x128xf32>
    %3 = tpu.matmul %0, %2, %cst {dimension_numbers = #tpu.dot_dimension_numbers<[1], [0], [0], [1], [0, 0, 1, 1], [], []>} : vector<8x128xbf16>, vector<128x128xbf16>, vector<8x128xf32> -> vector<8x128xf32>
    %c0_4 = arith.constant 0 : index
    %c0_5 = arith.constant 0 : index
    %c0_6 = arith.constant 0 : index
    %4 = vector.load %arg3[%c0_4, %c0_5, %c0_6] : memref<3x1x128xf32, #tpu.memory_space<vmem>>, vector<1x1x128xf32>
    %5 = vector.shape_cast %4 : vector<1x1x128xf32> to vector<1x128xf32>
    %6 = vector.broadcast %5 : vector<1x128xf32> to vector<8x128xf32>
    %7 = arith.addf %3, %6 : vector<8x128xf32>
    %cst_7 = arith.constant 0.000000e+00 : f32
    %8 = vector.broadcast %cst_7 : f32 to vector<8x128xf32>
    %9 = arith.maximumf %7, %8 : vector<8x128xf32>
    %10 = arith.truncf %9 : vector<8x128xf32> to vector<8x128xbf16>
    %c1 = arith.constant 1 : index
    %c0_8 = arith.constant 0 : index
    %c0_9 = arith.constant 0 : index
    %11 = vector.load %arg2[%c1, %c0_8, %c0_9] : memref<3x128x128xbf16, #tpu.memory_space<vmem>>, vector<1x128x128xbf16>
    %12 = vector.shape_cast %11 : vector<1x128x128xbf16> to vector<128x128xbf16>
    %cst_10 = arith.constant dense<0.000000e+00> : vector<8x128xf32>
    %13 = tpu.matmul %10, %12, %cst_10 {dimension_numbers = #tpu.dot_dimension_numbers<[1], [0], [0], [1], [0, 0, 1, 1], [], []>} : vector<8x128xbf16>, vector<128x128xbf16>, vector<8x128xf32> -> vector<8x128xf32>
    %c1_11 = arith.constant 1 : index
    %c0_12 = arith.constant 0 : index
    %c0_13 = arith.constant 0 : index
    %14 = vector.load %arg3[%c1_11, %c0_12, %c0_13] : memref<3x1x128xf32, #tpu.memory_space<vmem>>, vector<1x1x128xf32>
    %15 = vector.shape_cast %14 : vector<1x1x128xf32> to vector<1x128xf32>
    %16 = vector.broadcast %15 : vector<1x128xf32> to vector<8x128xf32>
    %17 = arith.addf %13, %16 : vector<8x128xf32>
    %cst_14 = arith.constant 0.000000e+00 : f32
    %18 = vector.broadcast %cst_14 : f32 to vector<8x128xf32>
    %19 = arith.maximumf %17, %18 : vector<8x128xf32>
    %20 = arith.truncf %19 : vector<8x128xf32> to vector<8x128xbf16>
    %c2 = arith.constant 2 : index
    %c0_15 = arith.constant 0 : index
    %c0_16 = arith.constant 0 : index
    %21 = vector.load %arg2[%c2, %c0_15, %c0_16] : memref<3x128x128xbf16, #tpu.memory_space<vmem>>, vector<1x128x128xbf16>
    %22 = vector.shape_cast %21 : vector<1x128x128xbf16> to vector<128x128xbf16>
    %cst_17 = arith.constant dense<0.000000e+00> : vector<8x128xf32>
    %23 = tpu.matmul %20, %22, %cst_17 {dimension_numbers = #tpu.dot_dimension_numbers<[1], [0], [0], [1], [0, 0, 1, 1], [], []>} : vector<8x128xbf16>, vector<128x128xbf16>, vector<8x128xf32> -> vector<8x128xf32>
    %c2_18 = arith.constant 2 : index
    %c0_19 = arith.constant 0 : index
    %c0_20 = arith.constant 0 : index
    %24 = vector.load %arg3[%c2_18, %c0_19, %c0_20] : memref<3x1x128xf32, #tpu.memory_space<vmem>>, vector<1x1x128xf32>
    %25 = vector.shape_cast %24 : vector<1x1x128xf32> to vector<1x128xf32>
    %26 = vector.broadcast %25 : vector<1x128xf32> to vector<8x128xf32>
    %27 = arith.addf %23, %26 : vector<8x128xf32>
    %cst_21 = arith.constant dense<0xFF800000> : vector<8xf32>
    %28 = vector.multi_reduction <maximumf>, %27, %cst_21 [1] : vector<8x128xf32> to vector<8xf32>
    %29 = vector.shape_cast %28 : vector<8xf32> to vector<8x1xf32>
    %30 = vector.broadcast %29 : vector<8x1xf32> to vector<8x128xf32>
    %31 = arith.subf %27, %30 : vector<8x128xf32>
    %32 = math.exp %31 : vector<8x128xf32>
    %cst_22 = arith.constant dense<0.000000e+00> : vector<8xf32>
    %33 = vector.multi_reduction <add>, %32, %cst_22 [1] : vector<8x128xf32> to vector<8xf32>
    %34 = vector.shape_cast %33 : vector<8xf32> to vector<8x1xf32>
    %35 = tpu.reciprocal %34 : vector<8x1xf32> -> vector<8x1xf32>
    %36 = vector.broadcast %35 : vector<8x1xf32> to vector<8x128xf32>
    %37 = arith.mulf %32, %36 : vector<8x128xf32>
    %c0_23 = arith.constant 0 : index
    %c0_24 = arith.constant 0 : index
    %38 = vector.load %arg4[%c0_23, %c0_24] : memref<8x128xf32, #tpu.memory_space<vmem>>, vector<8x128xf32>
    tpu.vector_store %arg4[%c0_23, %c0_24], %37 {strides = array<i32>} : memref<8x128xf32, #tpu.memory_space<vmem>>, vector<8x128xf32>,
    return
  }
  func.func @transform_0(%arg0: i32) -> (i32, i32) {
    %c0_i32 = arith.constant 0 : i32
    %c0_i32_0 = arith.constant 0 : i32
    return %arg0, %c0_i32 : i32, i32
  }
  func.func @transform_1(%arg0: i32) -> (i32, i32, i32) {
    %c0_i32 = arith.constant 0 : i32
    %c0_i32_0 = arith.constant 0 : i32
    %c0_i32_1 = arith.constant 0 : i32
    %c0_i32_2 = arith.constant 0 : i32
    return %c0_i32, %c0_i32_0, %c0_i32_1 : i32, i32, i32
  }
  func.func @transform_2(%arg0: i32) -> (i32, i32, i32) {
    %c0_i32 = arith.constant 0 : i32
    %c0_i32_0 = arith.constant 0 : i32
    %c0_i32_1 = arith.constant 0 : i32
    %c0_i32_2 = arith.constant 0 : i32
    return %c0_i32, %c0_i32_0, %c0_i32_1 : i32, i32, i32
  }
  func.func @transform_3(%arg0: i32) -> (i32, i32) {
    %c0_i32 = arith.constant 0 : i32
    %c0_i32_0 = arith.constant 0 : i32
    return %arg0, %c0_i32 : i32, i32
  }
}

</mosaic_0001>

<llo_original>
// kernel: rhc_forward.1
$region0: #{rhc_forward.1}
  #allocation0 [shape = 'u32[]', space=smem, size = 0x4, offset = 0x4, fixed_abs, tag = 'smem constant byte address 0x4 - core index']
  #allocation1 [shape = 'u32[144,128]{1,0:T(1,128)}', space=vmem, size = 0x12000, scoped, tag = 'internal scratch']
  %s0 = inlined_call_operand.vmem [shape: bf16[8,128], index: 0, kind: input, shape index: {}]
  %s1 = inlined_call_operand.vmem [shape: bf16[3,128,128], index: 1, kind: input, shape index: {}]
  %s2 = inlined_call_operand.vmem [shape: f32[3,1,128], index: 2, kind: input, shape index: {}]
  %s3 = inlined_call_operand.hbm [shape: f32[8,128], index: 3, kind: output, shape index: {}]
  %s4 = sld [smem:[#allocation0]]
  $region22: #{rhc_forward.1} parent=0
    _
  %s6 = ssub.s32 1, %s4
  %s7 = scalar_select 0, %s6, %s4
  $region1: #{rhc_forward.1} parent=0
    #allocation2 [shape = 'u8[4096]{0}', space=vmem, size = 0x1000, scoped, tag = 'output window, operand 0, single buffered']
    #allocation3 [shape = 's32[1]{0}', space=sflag, size = 0x4, scoped, tag = 'scoped memory for rhc_forward.1']
    %8 = vsyncpa [#allocation3], 0
    // Predicated region
    $region2: #{rhc_forward.1} parent=1 // pred_check
      _
    $region3: #{rhc_forward.1} parent=1 // pred_check_branch
      %10 = sbr.rel (0) target = $region5
    $region4: #{rhc_forward.1} parent=1 // pred_region
      _
    $region5: #{rhc_forward.1} parent=1 // pred_fallthru
      _
    // Predicated region
    $region6: #{rhc_forward.1} parent=1 // pred_check
      _
    $region7: #{rhc_forward.1} parent=1 // pred_check_branch
      %12 = sbr.rel (0) target = $region9
    $region8: #{rhc_forward.1} parent=1 // pred_region
      _
    $region9: #{rhc_forward.1} parent=1 // pred_fallthru
      _
    // Predicated region
    $region10: #{rhc_forward.1} parent=1 // pred_check
      _
    $region11: #{rhc_forward.1} parent=1 // pred_check_branch
      %14 = sbr.rel (0) target = $region13
    $region12: #{rhc_forward.1} parent=1 // pred_region
      _
    $region13: #{rhc_forward.1} parent=1 // pred_fallthru
      _
    %v16 = vld [vmem:[%s0] sm:$0xf]
    %v17 = vld [vmem:[%s1] sm:$0xf]
    %v18 = vld [vmem:[%s1 + $0x4] sm:$0xf]
    %v19 = vld [vmem:[%s1 + $0x8] sm:$0xf]
    %v20 = vld [vmem:[%s1 + $0xc] sm:$0xf]
    %v21 = vld [vmem:[%s1 + $0x10] sm:$0xf]
    %v22 = vld [vmem:[%s1 + $0x14] sm:$0xf]
    %v23 = vld [vmem:[%s1 + $0x18] sm:$0xf]
    %v24 = vld [vmem:[%s1 + $0x1c] sm:$0xf]
    %v25 = vld [vmem:[%s1 + $0x20] sm:$0xf]
    %v26 = vld [vmem:[%s1 + $0x24] sm:$0xf]
    %v27 = vld [vmem:[%s1 + $0x28] sm:$0xf]
    %v28 = vld [vmem:[%s1 + $0x2c] sm:$0xf]
    %v29 = vld [vmem:[%s1 + $0x30] sm:$0xf]
    %v30 = vld [vmem:[%s1 + $0x34] sm:$0xf]
    %v31 = vld [vmem:[%s1 + $0x38] sm:$0xf]
    %v32 = vld [vmem:[%s1 + $0x3c] sm:$0xf]
    %v33 = vld [vmem:[%s2] sm:$0x1]
    %v35 = vlaneseq
    %v36 = vshrl.u32 %v35, 7
    %v37 = vsub.s32 0, %v36
    %v38 = vrot.slane %v33, %v37
    %v56 = vunpack.c.l.b16 %v17
    %v57 = vunpack.c.l.b16 %v18
    %v58 = vunpack.c.l.b16 %v19
    %v59 = vunpack.c.l.b16 %v20
    %v60 = vunpack.c.l.b16 %v21
    %v61 = vunpack.c.l.b16 %v22
    %v62 = vunpack.c.l.b16 %v23
    %v63 = vunpack.c.l.b16 %v24
    %v64 = vunpack.c.l.b16 %v25
    %v65 = vunpack.c.l.b16 %v26
    %v66 = vunpack.c.l.b16 %v27
    %v67 = vunpack.c.l.b16 %v28
    %v68 = vunpack.c.l.b16 %v29
    %v69 = vunpack.c.l.b16 %v30
    %v70 = vunpack.c.l.b16 %v31
    %v71 = vunpack.c.l.b16 %v32
    %v72 = vpack.c.b16 %v57, %v56
    %v73 = vpack.c.b16 %v59, %v58
    %v74 = vpack.c.b16 %v61, %v60
    %v75 = vpack.c.b16 %v63, %v62
    %v76 = vpack.c.b16 %v65, %v64
    %v77 = vpack.c.b16 %v67, %v66
    %v78 = vpack.c.b16 %v69, %v68
    %v79 = vpack.c.b16 %v71, %v70
    %88 = vmatprep.subr.bf16.mxu0 0
    %89 = vmatpush1.bf16.msra.mxu0 %v72
    %90 = vmatprep.subr.bf16.mxu0 0
    %91 = vmatpush1.bf16.msra.mxu0 %v73
    %92 = vmatprep.subr.bf16.mxu0 0
    %93 = vmatpush1.bf16.msra.mxu0 %v74
    %94 = vmatprep.subr.bf16.mxu0 0
    %95 = vmatpush1.bf16.msra.mxu0 %v75
    %96 = vmatprep.subr.bf16.mxu0 0
    %97 = vmatpush1.bf16.msra.mxu0 %v76
    %98 = vmatprep.subr.bf16.mxu0 0
    %99 = vmatpush1.bf16.msra.mxu0 %v77
    %100 = vmatprep.subr.bf16.mxu0 0
    %101 = vmatpush1.bf16.msra.mxu0 %v78
    %102 = vmatprep.subr.bf16.mxu0 0
    %103 = vmatpush1.bf16.msra.mxu0 %v79
    %104 = vmatprep.subr.bf16.mxu0 0
    %105 = vmatpush1.bf16.msra.mxu0 0
    %106 = vmatprep.subr.bf16.mxu0 0
    %107 = vmatpush1.bf16.msra.mxu0 0
    %108 = vmatprep.subr.bf16.mxu0 0
    %109 = vmatpush1.bf16.msra.mxu0 0
    %110 = vmatprep.subr.bf16.mxu0 0
    %111 = vmatpush1.bf16.msra.mxu0 0
    %112 = vmatprep.subr.bf16.mxu0 0
    %113 = vmatpush1.bf16.msra.mxu0 0
    %114 = vmatprep.subr.bf16.mxu0 0
    %115 = vmatpush1.bf16.msra.mxu0 0
    %116 = vmatprep.subr.bf16.mxu0 0
    %117 = vmatpush1.bf16.msra.mxu0 0
    %118 = vmatprep.subr.bf16.mxu0 0
    %119 = vmatpush1.bf16.msra.mxu0 0
    %120 = vmatprep.mubr.bf16.mxu0 0
    %121 = vmatmul.mubr.bf16.gmra.mrb[0].mxu0 %v16
    %v122 = vpop.f32.mrb[0].mxu0
    %v123 = vadd.f32 %v38, %v122
    %v124 = vpop.f32.mrb[0].mxu0
    %v125 = vpop.f32.mrb[0].mxu0
    %v126 = vpop.f32.mrb[0].mxu0
    %127 = vdwg.mxu0
    %v128 = vmax.f32 %v123, 0.0
    %v129 = vpack.c.bf16 %v128, %v128
    %s130 = scalar_lea.vmem %s1, 64
    %v131 = vld [vmem:[%s130] sm:$0xf]
    %v132 = vld [vmem:[%s130 + $0x4] sm:$0xf]
    %v133 = vld [vmem:[%s130 + $0x8] sm:$0xf]
    %v134 = vld [vmem:[%s130 + $0xc] sm:$0xf]
    %v135 = vld [vmem:[%s130 + $0x10] sm:$0xf]
    %v136 = vld [vmem:[%s130 + $0x14] sm:$0xf]
    %v137 = vld [vmem:[%s130 + $0x18] sm:$0xf]
    %v138 = vld [vmem:[%s130 + $0x1c] sm:$0xf]
    %v139 = vld [vmem:[%s130 + $0x20] sm:$0xf]
    %v140 = vld [vmem:[%s130 + $0x24] sm:$0xf]
    %v141 = vld [vmem:[%s130 + $0x28] sm:$0xf]
    %v142 = vld [vmem:[%s130 + $0x2c] sm:$0xf]
    %v143 = vld [vmem:[%s130 + $0x30] sm:$0xf]
    %v144 = vld [vmem:[%s130 + $0x34] sm:$0xf]
    %v145 = vld [vmem:[%s130 + $0x38] sm:$0xf]
    %v146 = vld [vmem:[%s130 + $0x3c] sm:$0xf]
    %s147 = scalar_lea.vmem %s2, 1
    %v148 = vld [vmem:[%s147] sm:$0x1]
    %v150 = vlaneseq
    %v151 = vshrl.u32 %v150, 7
    %v152 = vsub.s32 0, %v151
    %v153 = vrot.slane %v148, %v152
    %v171 = vunpack.c.l.b16 %v131
    %v172 = vunpack.c.l.b16 %v132
    %v173 = vunpack.c.l.b16 %v133
    %v174 = vunpack.c.l.b16 %v134
    %v175 = vunpack.c.l.b16 %v135
    %v176 = vunpack.c.l.b16 %v136
    %v177 = vunpack.c.l.b16 %v137
    %v178 = vunpack.c.l.b16 %v138
    %v179 = vunpack.c.l.b16 %v139
    %v180 = vunpack.c.l.b16 %v140
    %v181 = vunpack.c.l.b16 %v141
    %v182 = vunpack.c.l.b16 %v142
    %v183 = vunpack.c.l.b16 %v143
    %v184 = vunpack.c.l.b16 %v144
    %v185 = vunpack.c.l.b16 %v145
    %v186 = vunpack.c.l.b16 %v146
    %v187 = vpack.c.b16 %v172, %v171
    %v188 = vpack.c.b16 %v174, %v173
    %v189 = vpack.c.b16 %v176, %v175
    %v190 = vpack.c.b16 %v178, %v177
    %v191 = vpack.c.b16 %v180, %v179
    %v192 = vpack.c.b16 %v182, %v181
    %v193 = vpack.c.b16 %v184, %v183
    %v194 = vpack.c.b16 %v186, %v185
    %203 = vmatprep.subr.bf16.mxu0 0
    %204 = vmatpush1.bf16.msra.mxu0 %v187
    %205 = vmatprep.subr.bf16.mxu0 0
    %206 = vmatpush1.bf16.msra.mxu0 %v188
    %207 = vmatprep.subr.bf16.mxu0 0
    %208 = vmatpush1.bf16.msra.mxu0 %v189
    %209 = vmatprep.subr.bf16.mxu0 0
    %210 = vmatpush1.bf16.msra.mxu0 %v190
    %211 = vmatprep.subr.bf16.mxu0 0
    %212 = vmatpush1.bf16.msra.mxu0 %v191
    %213 = vmatprep.subr.bf16.mxu0 0
    %214 = vmatpush1.bf16.msra.mxu0 %v192
    %215 = vmatprep.subr.bf16.mxu0 0
    %216 = vmatpush1.bf16.msra.mxu0 %v193
    %217 = vmatprep.subr.bf16.mxu0 0
    %218 = vmatpush1.bf16.msra.mxu0 %v194
    %219 = vmatprep.subr.bf16.mxu0 0
    %220 = vmatpush1.bf16.msra.mxu0 0
    %221 = vmatprep.subr.bf16.mxu0 0
    %222 = vmatpush1.bf16.msra.mxu0 0
    %223 = vmatprep.subr.bf16.mxu0 0
    %224 = vmatpush1.bf16.msra.mxu0 0
    %225 = vmatprep.subr.bf16.mxu0 0
    %226 = vmatpush1.bf16.msra.mxu0 0
    %227 = vmatprep.subr.bf16.mxu0 0
    %228 = vmatpush1.bf16.msra.mxu0 0
    %229 = vmatprep.subr.bf16.mxu0 0
    %230 = vmatpush1.bf16.msra.mxu0 0
    %231 = vmatprep.subr.bf16.mxu0 0
    %232 = vmatpush1.bf16.msra.mxu0 0
    %233 = vmatprep.subr.bf16.mxu0 0
    %234 = vmatpush1.bf16.msra.mxu0 0
    %235 = vmatprep.mubr.bf16.mxu0 0
    %236 = vmatmul.mubr.bf16.gmra.mrb[0].mxu0 %v129
    %v237 = vpop.f32.mrb[0].mxu0
    %v238 = vadd.f32 %v153, %v237
    %v239 = vpop.f32.mrb[0].mxu0
    %v240 = vpop.f32.mrb[0].mxu0
    %v241 = vpop.f32.mrb[0].mxu0
    %242 = vdwg.mxu0
    %v243 = vmax.f32 %v238, 0.0
    %v244 = vpack.c.bf16 %v243, %v243
    %s245 = scalar_lea.vmem %s1, 128
    %v246 = vld [vmem:[%s245] sm:$0xf]
    %v247 = vld [vmem:[%s245 + $0x4] sm:$0xf]
    %v248 = vld [vmem:[%s245 + $0x8] sm:$0xf]
    %v249 = vld [vmem:[%s245 + $0xc] sm:$0xf]
    %v250 = vld [vmem:[%s245 + $0x10] sm:$0xf]
    %v251 = vld [vmem:[%s245 + $0x14] sm:$0xf]
    %v252 = vld [vmem:[%s245 + $0x18] sm:$0xf]
    %v253 = vld [vmem:[%s245 + $0x1c] sm:$0xf]
    %v254 = vld [vmem:[%s245 + $0x20] sm:$0xf]
    %v255 = vld [vmem:[%s245 + $0x24] sm:$0xf]
    %v256 = vld [vmem:[%s245 + $0x28] sm:$0xf]
    %v257 = vld [vmem:[%s245 + $0x2c] sm:$0xf]
    %v258 = vld [vmem:[%s245 + $0x30] sm:$0xf]
    %v259 = vld [vmem:[%s245 + $0x34] sm:$0xf]
    %v260 = vld [vmem:[%s245 + $0x38] sm:$0xf]
    %v261 = vld [vmem:[%s245 + $0x3c] sm:$0xf]
    %s262 = scalar_lea.vmem %s2, 2
    %v263 = vld [vmem:[%s262] sm:$0x1]
    %v265 = vlaneseq
    %v266 = vshrl.u32 %v265, 7
    %v267 = vsub.s32 0, %v266
    %v268 = vrot.slane %v263, %v267
    %v286 = vunpack.c.l.b16 %v246
    %v287 = vunpack.c.l.b16 %v247
    %v288 = vunpack.c.l.b16 %v248
    %v289 = vunpack.c.l.b16 %v249
    %v290 = vunpack.c.l.b16 %v250
    %v291 = vunpack.c.l.b16 %v251
    %v292 = vunpack.c.l.b16 %v252
    %v293 = vunpack.c.l.b16 %v253
    %v294 = vunpack.c.l.b16 %v254
    %v295 = vunpack.c.l.b16 %v255
    %v296 = vunpack.c.l.b16 %v256
    %v297 = vunpack.c.l.b16 %v257
    %v298 = vunpack.c.l.b16 %v258
    %v299 = vunpack.c.l.b16 %v259
    %v300 = vunpack.c.l.b16 %v260
    %v301 = vunpack.c.l.b16 %v261
    %v302 = vpack.c.b16 %v287, %v286
    %v303 = vpack.c.b16 %v289, %v288
    %v304 = vpack.c.b16 %v291, %v290
    %v305 = vpack.c.b16 %v293, %v292
    %v306 = vpack.c.b16 %v295, %v294
    %v307 = vpack.c.b16 %v297, %v296
    %v308 = vpack.c.b16 %v299, %v298
    %v309 = vpack.c.b16 %v301, %v300
    %318 = vmatprep.subr.bf16.mxu0 0
    %319 = vmatpush1.bf16.msra.mxu0 %v302
    %320 = vmatprep.subr.bf16.mxu0 0
    %321 = vmatpush1.bf16.msra.mxu0 %v303
    %322 = vmatprep.subr.bf16.mxu0 0
    %323 = vmatpush1.bf16.msra.mxu0 %v304
    %324 = vmatprep.subr.bf16.mxu0 0
    %325 = vmatpush1.bf16.msra.mxu0 %v305
    %326 = vmatprep.subr.bf16.mxu0 0
    %327 = vmatpush1.bf16.msra.mxu0 %v306
    %328 = vmatprep.subr.bf16.mxu0 0
    %329 = vmatpush1.bf16.msra.mxu0 %v307
    %330 = vmatprep.subr.bf16.mxu0 0
    %331 = vmatpush1.bf16.msra.mxu0 %v308
    %332 = vmatprep.subr.bf16.mxu0 0
    %333 = vmatpush1.bf16.msra.mxu0 %v309
    %334 = vmatprep.subr.bf16.mxu0 0
    %335 = vmatpush1.bf16.msra.mxu0 0
    %336 = vmatprep.subr.bf16.mxu0 0
    %337 = vmatpush1.bf16.msra.mxu0 0
    %338 = vmatprep.subr.bf16.mxu0 0
    %339 = vmatpush1.bf16.msra.mxu0 0
    %340 = vmatprep.subr.bf16.mxu0 0
    %341 = vmatpush1.bf16.msra.mxu0 0
    %342 = vmatprep.subr.bf16.mxu0 0
    %343 = vmatpush1.bf16.msra.mxu0 0
    %344 = vmatprep.subr.bf16.mxu0 0
    %345 = vmatpush1.bf16.msra.mxu0 0
    %346 = vmatprep.subr.bf16.mxu0 0
    %347 = vmatpush1.bf16.msra.mxu0 0
    %348 = vmatprep.subr.bf16.mxu0 0
    %349 = vmatpush1.bf16.msra.mxu0 0
    %350 = vmatprep.mubr.bf16.mxu0 0
    %351 = vmatmul.mubr.bf16.gmra.mrb[0].mxu0 %v244
    %v352 = vpop.f32.mrb[0].mxu0
    %v353 = vadd.f32 %v268, %v352
    %v354 = vpop.f32.mrb[0].mxu0
    %v355 = vpop.f32.mrb[0].mxu0
    %v356 = vpop.f32.mrb[0].mxu0
    %357 = vdwg.mxu0
    %358 = vmax.xlane.f32.xlu0 %v353
    %v359 = vpop.xlane.xlu0 %358
    %v360 = vsub.f32 %v353, %v359
    %v361 = vmul.f32 %v360, 1.442695
    %v362 = vpow.pop %v361
    %363 = vadd.xlane.f32.xlu0 %v362
    %v364 = vpop.xlane.xlu0 %363
    %v365 = vrcp.pop %v364
    %v366 = vmul.f32 %v362, %v365
    %367 = vst [vmem:[#allocation2] sm:$0xff] %v366
    // Predicated region
    $region14: #{rhc_forward.1} parent=1 // pred_check
      _
    $region15: #{rhc_forward.1} parent=1 // pred_check_branch
      %369 = sbr.rel (0) target = $region17
    $region16: #{rhc_forward.1} parent=1 // pred_region
      %s371 = ssub.s32 128, 128
      %372 = vsyncadd [#allocation3], %s371
      %s374 = sshll.u32 [#allocation2], 4
      %s375 = int_to_ptr.vmem [resolvable:$true] %s374
      %377 = dma.vmem_to_hbm [thread:$0]  %s375, 128, %s3, [#allocation3]
    $region17: #{rhc_forward.1} parent=1 // pred_fallthru
      _
    // Predicated region
    $region18: #{rhc_forward.1} parent=1 // pred_check
      _
    $region19: #{rhc_forward.1} parent=1 // pred_check_branch
      %379 = sbr.rel (0) target = $region21
    $region20: #{rhc_forward.1} parent=1 // pred_region
      %380 = dma.done [#allocation3], 128
    $region21: #{rhc_forward.1} parent=1 // pred_fallthru
      _
    %381 = vsyncpa [#allocation3], 1

</llo_original>
